<compile_context>
chip_gen: v7x
topology: tpu7x:2x2x1
jax: 0.10.0
libtpu: 0.0.40
codegen_flags: <defaults>
</compile_context>

<pallas_src>
import functools
import math

import jax
import jax.numpy as jnp
from jax import lax
from jax.experimental import pallas as pl
from jax.experimental.pallas import tpu as pltpu


def _round_up(x, m):
    return (x + m - 1) // m * m


# ----------------------------- kernel 1: fused QKV projection -----------------------------

def _qkv_proj_kernel(x_ref, w_ref, qkv_ref, acc_ref):
    # grid = (row tiles [parallel], N tiles [parallel], K tiles [arbitrary/reduction])
    @pl.when(pl.program_id(2) == 0)
    def _():
        acc_ref[...] = jnp.zeros_like(acc_ref)

    acc_ref[...] += jnp.dot(
        x_ref[...], w_ref[...], preferred_element_type=jnp.float32)

    @pl.when(pl.program_id(2) == pl.num_programs(2) - 1)
    def _():
        qkv_ref[...] = acc_ref[...].astype(qkv_ref.dtype)


# --------------------- kernel 2a: attention with VMEM-resident K/V (primary) ---------------------

def _attn_resident_kernel(q_ref, k_ref, v_ref, o_ref, *, block_kv, seq_len):
    block_q, d_pad = q_ref.shape
    q = q_ref[...]                      # scale already folded into Wq

    def step(k_chunk, v_chunk, m, l, acc, keep_mask=None):
        # scores: contract last dim of Q with last dim of K (no materialized transpose)
        s = lax.dot_general(q, k_chunk,
                            dimension_numbers=(((1,), (1,)), ((), ())),
                            preferred_element_type=jnp.float32)
        if keep_mask is not None:
            s = jnp.where(keep_mask, s, jnp.float32(-1e30))
        m_new = jnp.maximum(m, s.max(axis=-1, keepdims=True))
        alpha = jnp.exp(m - m_new)
        p = jnp.exp(s - m_new)          # f32 softmax math (v5e-safe)
        l_new = alpha * l + p.sum(axis=-1, keepdims=True)
        acc_new = alpha * acc + jnp.dot(
            p.astype(v_chunk.dtype), v_chunk, preferred_element_type=jnp.float32)
        return m_new, l_new, acc_new

    m0 = jnp.full((block_q, 1), -jnp.inf, dtype=jnp.float32)
    l0 = jnp.zeros((block_q, 1), dtype=jnp.float32)
    acc0 = jnp.zeros((block_q, d_pad), dtype=jnp.float32)

    n_full = seq_len // block_kv        # kv chunks with no padded columns
    tail = seq_len % block_kv           # remaining (padded) columns, at most one chunk

    def body(i, carry):
        m, l, acc = carry
        start = pl.multiple_of(i * block_kv, block_kv)
        k_c = k_ref[pl.ds(start, block_kv), :]
        v_c = v_ref[pl.ds(start, block_kv), :]
        return step(k_c, v_c, m, l, acc)

    m, l, acc = lax.fori_loop(0, n_full, body, (m0, l0, acc0))

    if tail:  # static: mask cost paid only on the single partial tail chunk
        start = n_full * block_kv
        k_c = k_ref[pl.ds(start, block_kv), :]
        v_c = v_ref[pl.ds(start, block_kv), :]
        col = start + lax.broadcasted_iota(jnp.int32, (block_q, block_kv), 1)
        m, l, acc = step(k_c, v_c, m, l, acc, keep_mask=(col < seq_len))

    inv_l = pl.reciprocal(l, approx=False)   # once per q block -> exact, off the critical path
    o_ref[...] = (acc * inv_l).astype(o_ref.dtype)


# ----------------- kernel 2b: tiled 2-D-grid attention (fallback for huge K/V) -----------------

def _attn_tiled_kernel(q_ref, k_ref, v_ref, o_ref, m_sc, l_sc, acc_sc, *, seq_len, block_kv):
    kv = pl.program_id(1)
    n_kv = pl.num_programs(1)

    @pl.when(kv == 0)
    def _():
        m_sc[...] = jnp.full_like(m_sc, -jnp.inf)
        l_sc[...] = jnp.zeros_like(l_sc)
        acc_sc[...] = jnp.zeros_like(acc_sc)

    s = lax.dot_general(q_ref[...], k_ref[...],
                        dimension_numbers=(((1,), (1,)), ((), ())),
                        preferred_element_type=jnp.float32)

    # Only the last kv block can contain padded columns (padding < block_kv by construction).
    if seq_len % block_kv != 0:
        col = kv * block_kv + lax.broadcasted_iota(jnp.int32, s.shape, 1)
        s = jnp.where(col < seq_len, s, jnp.float32(-1e30))

    m_prev = m_sc[...]
    m_new = jnp.maximum(m_prev, s.max(axis=-1, keepdims=True))
    alpha = jnp.exp(m_prev - m_new)
    p = jnp.exp(s - m_new)
    l_sc[...] = alpha * l_sc[...] + p.sum(axis=-1, keepdims=True)
    acc_sc[...] = alpha * acc_sc[...] + jnp.dot(
        p.astype(v_ref.dtype), v_ref[...], preferred_element_type=jnp.float32)
    m_sc[...] = m_new

    @pl.when(kv == n_kv - 1)
    def _():
        inv_l = pl.reciprocal(l_sc[...], approx=False)
        o_ref[...] = (acc_sc[...] * inv_l).astype(o_ref.dtype)


# ----------------------------------------- wrapper -----------------------------------------

def self_attention_v1(x, w_query, w_key, w_value, *, qkv_dtype=None,
                      kv_resident_max_bytes=12 * 1024 * 1024, return_qkv=False):
    """Pallas TPU implementation of SelfAttention_v1.forward.

    x: (seq_len, d_in); w_*: (d_in, d_out); returns (seq_len, d_out).
    qkv_dtype: dtype of the projected Q/K/V slab (jnp.bfloat16 recommended for throughput;
               default keeps the input dtype for exact f32 math).
    """
    seq_len, d_in = x.shape
    d_out = w_query.shape[1]
    out_dtype = x.dtype
    if qkv_dtype is None:
        qkv_dtype = x.dtype

    # Lane-dense head dimension.
    d_pad = _round_up(d_out, 128)

    # Attention q block: 128-aligned, capped at 512 so seq > 512 always yields >= 2 q blocks
    # (lets the v7x dual TensorCores both get work via the "parallel" q axis).
    block_q = min(512, _round_up(seq_len, 128))
    s_pad = _round_up(seq_len, block_q)
    block_kv = block_q        # == block_q keeps seq padding confined to one tail kv chunk

    # Projection K-dim tiling (only needed for very large d_in).
    if d_in <= 1024:
        d_in_pad, k_blk = d_in, d_in
    else:
        d_in_pad, k_blk = _round_up(d_in, 512), 512

    # Zero padding does not change the math (padded score columns are masked; padded value
    # columns produce zeros that are sliced off).
    x_p = jnp.zeros((s_pad, d_in_pad), dtype=x.dtype).at[:seq_len, :d_in].set(x)

    scale = 1.0 / math.sqrt(d_out)     # keys.shape[-1] in the PyTorch module

    def _pad_w(w):
        return jnp.zeros((d_in_pad, d_pad), dtype=w.dtype).at[:d_in, :d_out].set(w)

    # Fold the softmax scale into Wq once at trace time (removes per-kv-step Q scaling).
    w_qkv = jnp.concatenate(
        [_pad_w(w_query * jnp.asarray(scale, w_query.dtype)), _pad_w(w_key), _pad_w(w_value)],
        axis=1)                                                     # (d_in_pad, 3*d_pad)

    n_total = 3 * d_pad
    n_blk = n_total if n_total <= 2048 else d_pad                   # tile the fused-weight N dim
    # Projection row tile: multiple of block_q, target ~1024 rows (fills the 256-wide MXU on
    # v6e/v7x and amortizes the ~0.35us per-grid-step overhead), never exceeding s_pad.
    row_blk = block_q * min(max(1, 1024 // block_q), s_pad // block_q)

    # ---- kernel 1: fused, tiled QKV projection ----
    qkv = pl.pallas_call(
        _qkv_proj_kernel,
        out_shape=jax.ShapeDtypeStruct((s_pad, n_total), qkv_dtype),
        grid_spec=pltpu.PrefetchScalarGridSpec(
            num_scalar_prefetch=0,
            grid=(s_pad // row_blk, n_total // n_blk, d_in_pad // k_blk),
            in_specs=[
                pl.BlockSpec((row_blk, k_blk), lambda r, n, k: (r, k)),
                pl.BlockSpec((k_blk, n_blk), lambda r, n, k: (k, n)),
            ],
            out_specs=pl.BlockSpec((row_blk, n_blk), lambda r, n, k: (r, n)),
            scratch_shapes=[pltpu.VMEM((row_blk, n_blk), jnp.float32)],
        ),
        compiler_params=pltpu.CompilerParams(
            dimension_semantics=("parallel", "parallel", "arbitrary"),
            vmem_limit_bytes=48 * 1024 * 1024),
    )(x_p, w_qkv)

    # ---- kernel 2: flash-style attention over the projected Q/K/V slabs ----
    kv_bytes = 2 * s_pad * d_pad * jnp.dtype(qkv_dtype).itemsize

    if kv_bytes <= kv_resident_max_bytes:
        # Primary path: K/V VMEM-resident (constant block index -> DMA'd once, not per q block).
        kernel = functools.partial(_attn_resident_kernel, block_kv=block_kv, seq_len=seq_len)
        out_p = pl.pallas_call(
            kernel,
            out_shape=jax.ShapeDtypeStruct((s_pad, d_pad), out_dtype),
            grid_spec=pltpu.PrefetchScalarGridSpec(
                num_scalar_prefetch=0,
                grid=(s_pad // block_q,),
                in_specs=[
                    pl.BlockSpec((block_q, d_pad), lambda qi: (qi, 0)),   # Q tile
                    pl.BlockSpec((s_pad, d_pad), lambda qi: (0, 1)),      # K (resident)
                    pl.BlockSpec((s_pad, d_pad), lambda qi: (0, 2)),      # V (resident)
                ],
                out_specs=pl.BlockSpec((block_q, d_pad), lambda qi: (qi, 0)),
            ),
            compiler_params=pltpu.CompilerParams(
                dimension_semantics=("parallel",),
                vmem_limit_bytes=48 * 1024 * 1024),
        )(qkv, qkv, qkv)
    else:
        # Fallback: 2-D (q, kv) grid with online-softmax scratch (K/V too big for VMEM).
        kernel = functools.partial(_attn_tiled_kernel, seq_len=seq_len, block_kv=block_kv)
        out_p = pl.pallas_call(
            kernel,
            out_shape=jax.ShapeDtypeStruct((s_pad, d_pad), out_dtype),
            grid_spec=pltpu.PrefetchScalarGridSpec(
                num_scalar_prefetch=0,
                grid=(s_pad // block_q, s_pad // block_kv),
                in_specs=[
                    pl.BlockSpec((block_q, d_pad), lambda qi, ki: (qi, 0)),   # Q
                    pl.BlockSpec((block_kv, d_pad), lambda qi, ki: (ki, 1)),  # K
                    pl.BlockSpec((block_kv, d_pad), lambda qi, ki: (ki, 2)),  # V
                ],
                out_specs=pl.BlockSpec((block_q, d_pad), lambda qi, ki: (qi, 0)),
                scratch_shapes=[
                    pltpu.VMEM((block_q, 1), jnp.float32),      # running max
                    pltpu.VMEM((block_q, 1), jnp.float32),      # running denom
                    pltpu.VMEM((block_q, d_pad), jnp.float32),  # acc
                ],
            ),
            compiler_params=pltpu.CompilerParams(
                dimension_semantics=("parallel", "arbitrary"),
                vmem_limit_bytes=48 * 1024 * 1024),
        )(qkv, qkv, qkv)

    out = out_p[:seq_len, :d_out]
    if return_qkv:
        return out, qkv
    return out


# ----------------------------------------- reference -----------------------------------------

def _reference(x, wq, wk, wv):
    keys = x @ wk
    queries = x @ wq
    values = x @ wv
    attn_scores = queries @ keys.T
    attn_weights = jax.nn.softmax(attn_scores / (keys.shape[-1] ** 0.5), axis=-1)
    return attn_weights @ values


if __name__ == "__main__":
    # ---- test 1: module's toy shapes, f32, resident-K/V path ----
    seq_len, d_in, d_out = 8, 32, 32
    kx, kq, kk, kv = jax.random.split(jax.random.PRNGKey(0), 4)
    x = jax.random.uniform(kx, (seq_len, d_in), dtype=jnp.float32)     # torch.rand -> U[0,1)
    w_query = jax.random.uniform(kq, (d_in, d_out), dtype=jnp.float32)
    w_key = jax.random.uniform(kk, (d_in, d_out), dtype=jnp.float32)
    w_value = jax.random.uniform(kv, (d_in, d_out), dtype=jnp.float32)

    out = jax.block_until_ready(self_attention_v1(x, w_query, w_key, w_value))
    ref = _reference(x, w_query, w_key, w_value)
    assert out.shape == (seq_len, d_out)
    assert jnp.allclose(out, ref, atol=1e-2, rtol=1e-2), "f32 resident path mismatch"

    # ---- test 2: same inputs, force the tiled 2-D-grid fallback path ----
    out_fb = jax.block_until_ready(
        self_attention_v1(x, w_query, w_key, w_value, kv_resident_max_bytes=0))
    assert jnp.allclose(out_fb, ref, atol=1e-2, rtol=1e-2), "f32 fallback path mismatch"

    # ---- test 3: longer sequence -> multi q-block grid, kv fori_loop + masked tail chunk ----
    seq2, din2, dout2 = 600, 48, 80
    k2 = jax.random.split(jax.random.PRNGKey(1), 4)
    x2 = jax.random.uniform(k2[0], (seq2, din2), dtype=jnp.float32)
    wq2 = jax.random.uniform(k2[1], (din2, dout2), dtype=jnp.float32)
    wk2 = jax.random.uniform(k2[2], (din2, dout2), dtype=jnp.float32)
    wv2 = jax.random.uniform(k2[3], (din2, dout2), dtype=jnp.float32)
    out2 = jax.block_until_ready(self_attention_v1(x2, wq2, wk2, wv2))
    ref2 = _reference(x2, wq2, wk2, wv2)
    assert out2.shape == (seq2, dout2)
    assert jnp.allclose(out2, ref2, atol=1e-2, rtol=1e-2), "f32 long-seq mismatch"

    # ---- test 4: bf16 Q/K/V slab (recommended production setting); verify the attention kernel
    #      against exact-math attention computed from the kernel's own bf16 projection. ----
    out_bf, qkv_bf = self_attention_v1(
        x2, wq2, wk2, wv2, qkv_dtype=jnp.bfloat16, return_qkv=True)
    out_bf = jax.block_until_ready(out_bf)
    d_pad2 = qkv_bf.shape[1] // 3
    q_bf = qkv_bf[:seq2, 0 * d_pad2:1 * d_pad2].astype(jnp.float32)   # scale folded into Wq
    k_bf = qkv_bf[:seq2, 1 * d_pad2:2 * d_pad2].astype(jnp.float32)
    v_bf = qkv_bf[:seq2, 2 * d_pad2:3 * d_pad2].astype(jnp.float32)
    mirror = (jax.nn.softmax(q_bf @ k_bf.T, axis=-1) @ v_bf)[:, :dout2]
    assert out_bf.shape == (seq2, dout2)
    assert bool(jnp.all(jnp.isfinite(out_bf)))
    assert jnp.allclose(out_bf, mirror, atol=2e-2, rtol=2e-2), "bf16 path mismatch"

    print("KERNEL_OK")
</pallas_src>

<mosaic_0001>
module attributes {stable_mosaic.version = 11 : i64} {
  func.func @_qkv_proj_kernel(%arg0: i32, %arg1: i32, %arg2: i32, %arg3: memref<128x32xf32, #tpu.memory_space<vmem>>, %arg4: memref<32x384xf32, #tpu.memory_space<vmem>>, %arg5: memref<128x384xf32, #tpu.memory_space<vmem>>, %arg6: memref<128x384xf32, #tpu.memory_space<vmem>>) attributes {dimension_semantics = [#tpu.dimension_semantics<parallel>, #tpu.dimension_semantics<parallel>, #tpu.dimension_semantics<arbitrary>], iteration_bounds = array<i64: 1, 1, 1>, scalar_prefetch = 0 : i64, scratch_operands = 1 : i64, tpu.core_type = #tpu.core_type<tc>, window_params = [{transform_indices = @transform_0, window_bounds = array<i64: 128, 32>}, {transform_indices = @transform_1, window_bounds = array<i64: 32, 384>}, {transform_indices = @transform_2, window_bounds = array<i64: 128, 384>}]} {
    %c0_i32 = arith.constant 0 : i32
    %0 = arith.cmpi eq, %arg2, %c0_i32 : i32
    %1 = arith.extui %0 : i1 to i32
    %c0_i32_0 = arith.constant 0 : i32
    %2 = arith.cmpi ne, %1, %c0_i32_0 : i32
    scf.if %2 {
      %cst_10 = arith.constant 0.000000e+00 : f32
      %12 = vector.broadcast %cst_10 : f32 to vector<128x384xf32>
      %c0_11 = arith.constant 0 : index
      %c0_12 = arith.constant 0 : index
      %13 = vector.load %arg6[%c0_11, %c0_12] : memref<128x384xf32, #tpu.memory_space<vmem>>, vector<128x384xf32>
      tpu.vector_store %arg6[%c0_11, %c0_12], %12 {strides = array<i32>} : memref<128x384xf32, #tpu.memory_space<vmem>>, vector<128x384xf32>,
    } else {
    }
    %c0 = arith.constant 0 : index
    %c0_1 = arith.constant 0 : index
    %3 = vector.load %arg6[%c0, %c0_1] : memref<128x384xf32, #tpu.memory_space<vmem>>, vector<128x384xf32>
    %c0_2 = arith.constant 0 : index
    %c0_3 = arith.constant 0 : index
    %4 = vector.load %arg3[%c0_2, %c0_3] : memref<128x32xf32, #tpu.memory_space<vmem>>, vector<128x32xf32>
    %c0_4 = arith.constant 0 : index
    %c0_5 = arith.constant 0 : index
    %5 = vector.load %arg4[%c0_4, %c0_5] : memref<32x384xf32, #tpu.memory_space<vmem>>, vector<32x384xf32>
    %cst = arith.constant dense<0.000000e+00> : vector<128x384xf32>
    %6 = tpu.matmul %4, %5, %cst {dimension_numbers = #tpu.dot_dimension_numbers<[1], [0], [0], [1], [0, 0, 1, 1], [], []>} : vector<128x32xf32>, vector<32x384xf32>, vector<128x384xf32> -> vector<128x384xf32>
    %7 = arith.addf %3, %6 : vector<128x384xf32>
    %c0_6 = arith.constant 0 : index
    %c0_7 = arith.constant 0 : index
    %8 = vector.load %arg6[%c0_6, %c0_7] : memref<128x384xf32, #tpu.memory_space<vmem>>, vector<128x384xf32>
    tpu.vector_store %arg6[%c0_6, %c0_7], %7 {strides = array<i32>} : memref<128x384xf32, #tpu.memory_space<vmem>>, vector<128x384xf32>,
    %c0_i32_8 = arith.constant 0 : i32
    %9 = arith.cmpi eq, %arg2, %c0_i32_8 : i32
    %10 = arith.extui %9 : i1 to i32
    %c0_i32_9 = arith.constant 0 : i32
    %11 = arith.cmpi ne, %10, %c0_i32_9 : i32
    scf.if %11 {
      %c0_10 = arith.constant 0 : index
      %c0_11 = arith.constant 0 : index
      %12 = vector.load %arg6[%c0_10, %c0_11] : memref<128x384xf32, #tpu.memory_space<vmem>>, vector<128x384xf32>
      %c0_12 = arith.constant 0 : index
      %c0_13 = arith.constant 0 : index
      %13 = vector.load %arg5[%c0_12, %c0_13] : memref<128x384xf32, #tpu.memory_space<vmem>>, vector<128x384xf32>
      tpu.vector_store %arg5[%c0_12, %c0_13], %12 {strides = array<i32>} : memref<128x384xf32, #tpu.memory_space<vmem>>, vector<128x384xf32>,
    } else {
    }
    return
  }
  func.func @transform_0(%arg0: i32, %arg1: i32, %arg2: i32) -> (i32, i32) {
    %c0_i32 = arith.constant 0 : i32
    return %arg0, %arg2 : i32, i32
  }
  func.func @transform_1(%arg0: i32, %arg1: i32, %arg2: i32) -> (i32, i32) {
    %c0_i32 = arith.constant 0 : i32
    return %arg2, %arg1 : i32, i32
  }
  func.func @transform_2(%arg0: i32, %arg1: i32, %arg2: i32) -> (i32, i32) {
    %c0_i32 = arith.constant 0 : i32
    return %arg0, %arg1 : i32, i32
  }
}

</mosaic_0001>

<llo_original>
// kernel: tpu_custom_call.1
$region0: #{tpu_custom_call.1}
  #allocation0 [shape = 'u32[]', space=smem, size = 0x4, offset = 0x4, fixed_abs, tag = 'smem constant byte address 0x4 - core index']
  #allocation1 [shape = 'u32[144,128]{1,0:T(1,128)}', space=vmem, size = 0x12000, scoped, tag = 'internal scratch']
  #allocation2 [shape = 'f32[128,384]{1,0:T(8,128)}', space=vmem, size = 0x30000, scoped, tag = 'scratch operand']
  %s0 = inlined_call_operand.vmem [shape: f32[128,32], index: 0, kind: input, shape index: {}]
  %s1 = inlined_call_operand.vmem [shape: f32[32,384], index: 1, kind: input, shape index: {}]
  %s2 = inlined_call_operand.hbm [shape: f32[128,384], index: 2, kind: output, shape index: {}]
  %s3 = sld [smem:[#allocation0]]
  $region26: #{tpu_custom_call.1} parent=0
    _
  %s5 = ssub.s32 1, %s3
  %s6 = scalar_select 0, %s5, %s3
  $region1: #{tpu_custom_call.1} parent=0
    #allocation3 [shape = 'u8[196608]{0}', space=vmem, size = 0x30000, scoped, tag = 'output window, operand 0, single buffered']
    #allocation4 [shape = 's32[1]{0}', space=sflag, size = 0x4, scoped, tag = 'scoped memory for tpu_custom_call.1']
    %7 = vsyncpa [#allocation4], 0
    // Predicated region
    $region2: #{tpu_custom_call.1} parent=1 // pred_check
      _
    $region3: #{tpu_custom_call.1} parent=1 // pred_check_branch
      %9 = sbr.rel (0) target = $region5
    $region4: #{tpu_custom_call.1} parent=1 // pred_region
      _
    $region5: #{tpu_custom_call.1} parent=1 // pred_fallthru
      _
    // Predicated region
    $region6: #{tpu_custom_call.1} parent=1 // pred_check
      _
    $region7: #{tpu_custom_call.1} parent=1 // pred_check_branch
      %11 = sbr.rel (0) target = $region9
    $region8: #{tpu_custom_call.1} parent=1 // pred_region
      _
    $region9: #{tpu_custom_call.1} parent=1 // pred_fallthru
      _
    %p12 = scmp.eq.s32.totalorder 0, 0
    // Predicated region
    $region10: #{tpu_custom_call.1} parent=1 // pred_check
      %p13 = pneg %p12
    $region11: #{tpu_custom_call.1} parent=1 // pred_check_branch
      %15 = sbr.rel (%p13) target = $region13
    $region12: #{tpu_custom_call.1} parent=1 // pred_region
      %16 = vst [vmem:[#allocation2] sm:$0xff] 0.0
      %17 = vst [vmem:[#allocation2 + $0x8] sm:$0xff] 0.0
      %18 = vst [vmem:[#allocation2 + $0x10] sm:$0xff] 0.0
      %19 = vst [vmem:[#allocation2 + $0x18] sm:$0xff] 0.0
      %20 = vst [vmem:[#allocation2 + $0x20] sm:$0xff] 0.0
      %21 = vst [vmem:[#allocation2 + $0x28] sm:$0xff] 0.0
      %22 = vst [vmem:[#allocation2 + $0x30] sm:$0xff] 0.0
      %23 = vst [vmem:[#allocation2 + $0x38] sm:$0xff] 0.0
      %24 = vst [vmem:[#allocation2 + $0x40] sm:$0xff] 0.0
      %25 = vst [vmem:[#allocation2 + $0x48] sm:$0xff] 0.0
      %26 = vst [vmem:[#allocation2 + $0x50] sm:$0xff] 0.0
      %27 = vst [vmem:[#allocation2 + $0x58] sm:$0xff] 0.0
      %28 = vst [vmem:[#allocation2 + $0x60] sm:$0xff] 0.0
      %29 = vst [vmem:[#allocation2 + $0x68] sm:$0xff] 0.0
      %30 = vst [vmem:[#allocation2 + $0x70] sm:$0xff] 0.0
      %31 = vst [vmem:[#allocation2 + $0x78] sm:$0xff] 0.0
      %32 = vst [vmem:[#allocation2 + $0x80] sm:$0xff] 0.0
      %33 = vst [vmem:[#allocation2 + $0x88] sm:$0xff] 0.0
      %34 = vst [vmem:[#allocation2 + $0x90] sm:$0xff] 0.0
      %35 = vst [vmem:[#allocation2 + $0x98] sm:$0xff] 0.0
      %36 = vst [vmem:[#allocation2 + $0xa0] sm:$0xff] 0.0
      %37 = vst [vmem:[#allocation2 + $0xa8] sm:$0xff] 0.0
      %38 = vst [vmem:[#allocation2 + $0xb0] sm:$0xff] 0.0
      %39 = vst [vmem:[#allocation2 + $0xb8] sm:$0xff] 0.0
      %40 = vst [vmem:[#allocation2 + $0xc0] sm:$0xff] 0.0
      %41 = vst [vmem:[#allocation2 + $0xc8] sm:$0xff] 0.0
      %42 = vst [vmem:[#allocation2 + $0xd0] sm:$0xff] 0.0
      %43 = vst [vmem:[#allocation2 + $0xd8] sm:$0xff] 0.0
      %44 = vst [vmem:[#allocation2 + $0xe0] sm:$0xff] 0.0
      %45 = vst [vmem:[#allocation2 + $0xe8] sm:$0xff] 0.0
      %46 = vst [vmem:[#allocation2 + $0xf0] sm:$0xff] 0.0
      %47 = vst [vmem:[#allocation2 + $0xf8] sm:$0xff] 0.0
      %48 = vst [vmem:[#allocation2 + $0x100] sm:$0xff] 0.0
      %49 = vst [vmem:[#allocation2 + $0x108] sm:$0xff] 0.0
      %50 = vst [vmem:[#allocation2 + $0x110] sm:$0xff] 0.0
      %51 = vst [vmem:[#allocation2 + $0x118] sm:$0xff] 0.0
      %52 = vst [vmem:[#allocation2 + $0x120] sm:$0xff] 0.0
      %53 = vst [vmem:[#allocation2 + $0x128] sm:$0xff] 0.0
      %54 = vst [vmem:[#allocation2 + $0x130] sm:$0xff] 0.0
      %55 = vst [vmem:[#allocation2 + $0x138] sm:$0xff] 0.0
      %56 = vst [vmem:[#allocation2 + $0x140] sm:$0xff] 0.0
      %57 = vst [vmem:[#allocation2 + $0x148] sm:$0xff] 0.0
      %58 = vst [vmem:[#allocation2 + $0x150] sm:$0xff] 0.0
      %59 = vst [vmem:[#allocation2 + $0x158] sm:$0xff] 0.0
      %60 = vst [vmem:[#allocation2 + $0x160] sm:$0xff] 0.0
      %61 = vst [vmem:[#allocation2 + $0x168] sm:$0xff] 0.0
      %62 = vst [vmem:[#allocation2 + $0x170] sm:$0xff] 0.0
      %63 = vst [vmem:[#allocation2 + $0x178] sm:$0xff] 0.0
    $region13: #{tpu_custom_call.1} parent=1 // pred_fallthru
      _
    %v64 = vld [vmem:[#allocation2] sm:$0xff]
    %v65 = vld [vmem:[#allocation2 + $0x8] sm:$0xff]
    %v66 = vld [vmem:[#allocation2 + $0x10] sm:$0xff]
    %v67 = vld [vmem:[#allocation2 + $0x18] sm:$0xff]
    %v68 = vld [vmem:[#allocation2 + $0x20] sm:$0xff]
    %v69 = vld [vmem:[#allocation2 + $0x28] sm:$0xff]
    %v70 = vld [vmem:[#allocation2 + $0x30] sm:$0xff]
    %v71 = vld [vmem:[#allocation2 + $0x38] sm:$0xff]
    %v72 = vld [vmem:[#allocation2 + $0x40] sm:$0xff]
    %v73 = vld [vmem:[#allocation2 + $0x48] sm:$0xff]
    %v74 = vld [vmem:[#allocation2 + $0x50] sm:$0xff]
    %v75 = vld [vmem:[#allocation2 + $0x58] sm:$0xff]
    %v76 = vld [vmem:[#allocation2 + $0x60] sm:$0xff]
    %v77 = vld [vmem:[#allocation2 + $0x68] sm:$0xff]
    %v78 = vld [vmem:[#allocation2 + $0x70] sm:$0xff]
    %v79 = vld [vmem:[#allocation2 + $0x78] sm:$0xff]
    %v80 = vld [vmem:[#allocation2 + $0x80] sm:$0xff]
    %v81 = vld [vmem:[#allocation2 + $0x88] sm:$0xff]
    %v82 = vld [vmem:[#allocation2 + $0x90] sm:$0xff]
    %v83 = vld [vmem:[#allocation2 + $0x98] sm:$0xff]
    %v84 = vld [vmem:[#allocation2 + $0xa0] sm:$0xff]
    %v85 = vld [vmem:[#allocation2 + $0xa8] sm:$0xff]
    %v86 = vld [vmem:[#allocation2 + $0xb0] sm:$0xff]
    %v87 = vld [vmem:[#allocation2 + $0xb8] sm:$0xff]
    %v88 = vld [vmem:[#allocation2 + $0xc0] sm:$0xff]
    %v89 = vld [vmem:[#allocation2 + $0xc8] sm:$0xff]
    %v90 = vld [vmem:[#allocation2 + $0xd0] sm:$0xff]
    %v91 = vld [vmem:[#allocation2 + $0xd8] sm:$0xff]
    %v92 = vld [vmem:[#allocation2 + $0xe0] sm:$0xff]
    %v93 = vld [vmem:[#allocation2 + $0xe8] sm:$0xff]
    %v94 = vld [vmem:[#allocation2 + $0xf0] sm:$0xff]
    %v95 = vld [vmem:[#allocation2 + $0xf8] sm:$0xff]
    %v96 = vld [vmem:[#allocation2 + $0x100] sm:$0xff]
    %v97 = vld [vmem:[#allocation2 + $0x108] sm:$0xff]
    %v98 = vld [vmem:[#allocation2 + $0x110] sm:$0xff]
    %v99 = vld [vmem:[#allocation2 + $0x118] sm:$0xff]
    %v100 = vld [vmem:[#allocation2 + $0x120] sm:$0xff]
    %v101 = vld [vmem:[#allocation2 + $0x128] sm:$0xff]
    %v102 = vld [vmem:[#allocation2 + $0x130] sm:$0xff]
    %v103 = vld [vmem:[#allocation2 + $0x138] sm:$0xff]
    %v104 = vld [vmem:[#allocation2 + $0x140] sm:$0xff]
    %v105 = vld [vmem:[#allocation2 + $0x148] sm:$0xff]
    %v106 = vld [vmem:[#allocation2 + $0x150] sm:$0xff]
    %v107 = vld [vmem:[#allocation2 + $0x158] sm:$0xff]
    %v108 = vld [vmem:[#allocation2 + $0x160] sm:$0xff]
    %v109 = vld [vmem:[#allocation2 + $0x168] sm:$0xff]
    %v110 = vld [vmem:[#allocation2 + $0x170] sm:$0xff]
    %v111 = vld [vmem:[#allocation2 + $0x178] sm:$0xff]
    %v112 = vld [vmem:[%s0] sm:$0xff]
    %v113 = vld [vmem:[%s0 + $0x8] sm:$0xff]
    %v114 = vld [vmem:[%s0 + $0x10] sm:$0xff]
    %v115 = vld [vmem:[%s0 + $0x18] sm:$0xff]
    %v116 = vld [vmem:[%s0 + $0x20] sm:$0xff]
    %v117 = vld [vmem:[%s0 + $0x28] sm:$0xff]
    %v118 = vld [vmem:[%s0 + $0x30] sm:$0xff]
    %v119 = vld [vmem:[%s0 + $0x38] sm:$0xff]
    %v120 = vld [vmem:[%s0 + $0x40] sm:$0xff]
    %v121 = vld [vmem:[%s0 + $0x48] sm:$0xff]
    %v122 = vld [vmem:[%s0 + $0x50] sm:$0xff]
    %v123 = vld [vmem:[%s0 + $0x58] sm:$0xff]
    %v124 = vld [vmem:[%s0 + $0x60] sm:$0xff]
    %v125 = vld [vmem:[%s0 + $0x68] sm:$0xff]
    %v126 = vld [vmem:[%s0 + $0x70] sm:$0xff]
    %v127 = vld [vmem:[%s0 + $0x78] sm:$0xff]
    %v128 = vld [vmem:[%s1] sm:$0xff]
    %v129 = vld [vmem:[%s1 + $0x8] sm:$0xff]
    %v130 = vld [vmem:[%s1 + $0x10] sm:$0xff]
    %v131 = vld [vmem:[%s1 + $0x18] sm:$0xff]
    %v132 = vld [vmem:[%s1 + $0x20] sm:$0xff]
    %v133 = vld [vmem:[%s1 + $0x28] sm:$0xff]
    %v134 = vld [vmem:[%s1 + $0x30] sm:$0xff]
    %v135 = vld [vmem:[%s1 + $0x38] sm:$0xff]
    %v136 = vld [vmem:[%s1 + $0x40] sm:$0xff]
    %v137 = vld [vmem:[%s1 + $0x48] sm:$0xff]
    %v138 = vld [vmem:[%s1 + $0x50] sm:$0xff]
    %v139 = vld [vmem:[%s1 + $0x58] sm:$0xff]
    %vm140 = vcmask 261120
    %v142 = vsel %vm140, %v112, 0
    %v145 = vsel %vm140, %v113, 0
    %v148 = vsel %vm140, %v114, 0
    %v151 = vsel %vm140, %v115, 0
    %v154 = vsel %vm140, %v116, 0
    %v157 = vsel %vm140, %v117, 0
    %v160 = vsel %vm140, %v118, 0
    %v163 = vsel %vm140, %v119, 0
    %v166 = vsel %vm140, %v120, 0
    %v169 = vsel %vm140, %v121, 0
    %v172 = vsel %vm140, %v122, 0
    %v175 = vsel %vm140, %v123, 0
    %v178 = vsel %vm140, %v124, 0
    %v181 = vsel %vm140, %v125, 0
    %v184 = vsel %vm140, %v126, 0
    %v187 = vsel %vm140, %v127, 0
    %189 = vmatprep.subr.mxu0 %v129
    %190 = vmatpush1.msra.mxu0 %v128
    %191 = vmatprep.subr.mxu0 %v132
    %192 = vmatpush1.msra.mxu0 %v131
    %193 = vmatprep.subr.mxu0 %v135
    %194 = vmatpush1.msra.mxu0 %v134
    %195 = vmatprep.subr.mxu0 %v138
    %196 = vmatpush1.msra.mxu0 %v137
    %197 = vmatprep.subr.mxu0 0.0
    %198 = vmatpush1.msra.mxu0 0.0
    %199 = vmatprep.subr.mxu0 0.0
    %200 = vmatpush1.msra.mxu0 0.0
    %201 = vmatprep.subr.mxu0 0.0
    %202 = vmatpush1.msra.mxu0 0.0
    %203 = vmatprep.subr.mxu0 0.0
    %204 = vmatpush1.msra.mxu0 0.0
    %205 = vmatprep.subr.mxu0 0.0
    %206 = vmatpush1.msra.mxu0 0.0
    %207 = vmatprep.subr.mxu0 0.0
    %208 = vmatpush1.msra.mxu0 0.0
    %209 = vmatprep.subr.mxu0 0.0
    %210 = vmatpush1.msra.mxu0 0.0
    %211 = vmatprep.subr.mxu0 0.0
    %212 = vmatpush1.msra.mxu0 0.0
    %213 = vmatprep.subr.mxu0 0.0
    %214 = vmatpush1.msra.mxu0 0.0
    %215 = vmatprep.subr.mxu0 0.0
    %216 = vmatpush1.msra.mxu0 0.0
    %217 = vmatprep.subr.mxu0 0.0
    %218 = vmatpush1.msra.mxu0 0.0
    %219 = vmatprep.subr.mxu0 0.0
    %220 = vmatpush1.msra.mxu0 0.0
    %221 = vmatprep.subr.mxu0 0.0
    %222 = vmatpush1.msra.mxu0 0.0
    %223 = vmatprep.subr.mxu0 0.0
    %224 = vmatpush1.msra.mxu0 0.0
    %225 = vmatprep.subr.mxu0 0.0
    %226 = vmatpush1.msra.mxu0 0.0
    %227 = vmatprep.subr.mxu0 0.0
    %228 = vmatpush1.msra.mxu0 0.0
    %229 = vmatprep.subr.mxu0 0.0
    %230 = vmatpush1.msra.mxu0 0.0
    %231 = vmatprep.subr.mxu0 0.0
    %232 = vmatpush1.msra.mxu0 0.0
    %233 = vmatprep.subr.mxu0 0.0
    %234 = vmatpush1.msra.mxu0 0.0
    %235 = vmatprep.subr.mxu0 0.0
    %236 = vmatpush1.msra.mxu0 0.0
    %237 = vmatprep.subr.mxu0 0.0
    %238 = vmatpush1.msra.mxu0 0.0
    %239 = vmatprep.subr.mxu0 0.0
    %240 = vmatpush1.msra.mxu0 0.0
    %241 = vmatprep.subr.mxu0 0.0
    %242 = vmatpush1.msra.mxu0 0.0
    %243 = vmatprep.subr.mxu0 0.0
    %244 = vmatpush1.msra.mxu0 0.0
    %245 = vmatprep.subr.mxu0 0.0
    %246 = vmatpush1.msra.mxu0 0.0
    %247 = vmatprep.subr.mxu0 0.0
    %248 = vmatpush1.msra.mxu0 0.0
    %249 = vmatprep.subr.mxu0 0.0
    %250 = vmatpush1.msra.mxu0 0.0
    %251 = vmatprep.subr.mxu0 0.0
    %252 = vmatpush1.msra.mxu0 0.0
    %253 = vmatprep.mubr.f32.mxu0 0.0
    %254 = vmatmul.mubr.f32.gmra.mrb[0].mxu0 %v142
    %v255 = vpop.f32.mrb[0].mxu0
    %v256 = vadd.f32 0.0, %v255
    %v257 = vpop.f32.mrb[0].mxu0
    %v258 = vadd.f32 0.0, %v257
    %259 = vmatprep.mubr.f32.mxu0 0.0
    %260 = vmatmul.mubr.f32.gmra.mrb[0].mxu0 %v145
    %v261 = vpop.f32.mrb[0].mxu0
    %v262 = vadd.f32 0.0, %v261
    %v263 = vpop.f32.mrb[0].mxu0
    %v264 = vadd.f32 0.0, %v263
    %265 = vmatprep.mubr.f32.mxu0 0.0
    %266 = vmatmul.mubr.f32.gmra.mrb[0].mxu0 %v148
    %v267 = vpop.f32.mrb[0].mxu0
    %v268 = vadd.f32 0.0, %v267
    %v269 = vpop.f32.mrb[0].mxu0
    %v270 = vadd.f32 0.0, %v269
    %271 = vmatprep.mubr.f32.mxu0 0.0
    %272 = vmatmul.mubr.f32.gmra.mrb[0].mxu0 %v151
    %v273 = vpop.f32.mrb[0].mxu0
    %v274 = vadd.f32 0.0, %v273
    %v275 = vpop.f32.mrb[0].mxu0
    %v276 = vadd.f32 0.0, %v275
    %277 = vmatprep.mubr.f32.mxu0 0.0
    %278 = vmatmul.mubr.f32.gmra.mrb[0].mxu0 %v154
    %v279 = vpop.f32.mrb[0].mxu0
    %v280 = vadd.f32 0.0, %v279
    %v281 = vpop.f32.mrb[0].mxu0
    %v282 = vadd.f32 0.0, %v281
    %283 = vmatprep.mubr.f32.mxu0 0.0
    %284 = vmatmul.mubr.f32.gmra.mrb[0].mxu0 %v157
    %v285 = vpop.f32.mrb[0].mxu0
    %v286 = vadd.f32 0.0, %v285
    %v287 = vpop.f32.mrb[0].mxu0
    %v288 = vadd.f32 0.0, %v287
    %289 = vmatprep.mubr.f32.mxu0 0.0
    %290 = vmatmul.mubr.f32.gmra.mrb[0].mxu0 %v160
    %v291 = vpop.f32.mrb[0].mxu0
    %v292 = vadd.f32 0.0, %v291
    %v293 = vpop.f32.mrb[0].mxu0
    %v294 = vadd.f32 0.0, %v293
    %295 = vmatprep.mubr.f32.mxu0 0.0
    %296 = vmatmul.mubr.f32.gmra.mrb[0].mxu0 %v163
    %v297 = vpop.f32.mrb[0].mxu0
    %v298 = vadd.f32 0.0, %v297
    %v299 = vpop.f32.mrb[0].mxu0
    %v300 = vadd.f32 0.0, %v299
    %301 = vmatprep.mubr.f32.mxu0 0.0
    %302 = vmatmul.mubr.f32.gmra.mrb[0].mxu0 %v166
    %v303 = vpop.f32.mrb[0].mxu0
    %v304 = vadd.f32 0.0, %v303
    %v305 = vpop.f32.mrb[0].mxu0
    %v306 = vadd.f32 0.0, %v305
    %307 = vmatprep.mubr.f32.mxu0 0.0
    %308 = vmatmul.mubr.f32.gmra.mrb[0].mxu0 %v169
    %v309 = vpop.f32.mrb[0].mxu0
    %v310 = vadd.f32 0.0, %v309
    %v311 = vpop.f32.mrb[0].mxu0
    %v312 = vadd.f32 0.0, %v311
    %313 = vmatprep.mubr.f32.mxu0 0.0
    %314 = vmatmul.mubr.f32.gmra.mrb[0].mxu0 %v172
    %v315 = vpop.f32.mrb[0].mxu0
    %v316 = vadd.f32 0.0, %v315
    %v317 = vpop.f32.mrb[0].mxu0
    %v318 = vadd.f32 0.0, %v317
    %319 = vmatprep.mubr.f32.mxu0 0.0
    %320 = vmatmul.mubr.f32.gmra.mrb[0].mxu0 %v175
    %v321 = vpop.f32.mrb[0].mxu0
    %v322 = vadd.f32 0.0, %v321
    %v323 = vpop.f32.mrb[0].mxu0
    %v324 = vadd.f32 0.0, %v323
    %325 = vmatprep.mubr.f32.mxu0 0.0
    %326 = vmatmul.mubr.f32.gmra.mrb[0].mxu0 %v178
    %v327 = vpop.f32.mrb[0].mxu0
    %v328 = vadd.f32 0.0, %v327
    %v329 = vpop.f32.mrb[0].mxu0
    %v330 = vadd.f32 0.0, %v329
    %331 = vmatprep.mubr.f32.mxu0 0.0
    %332 = vmatmul.mubr.f32.gmra.mrb[0].mxu0 %v181
    %v333 = vpop.f32.mrb[0].mxu0
    %v334 = vadd.f32 0.0, %v333
    %v335 = vpop.f32.mrb[0].mxu0
    %v336 = vadd.f32 0.0, %v335
    %337 = vmatprep.mubr.f32.mxu0 0.0
    %338 = vmatmul.mubr.f32.gmra.mrb[0].mxu0 %v184
    %v339 = vpop.f32.mrb[0].mxu0
    %v340 = vadd.f32 0.0, %v339
    %v341 = vpop.f32.mrb[0].mxu0
    %v342 = vadd.f32 0.0, %v341
    %343 = vmatprep.mubr.f32.mxu0 0.0
    %344 = vmatmul.mubr.f32.gmra.mrb[0].mxu0 %v187
    %v345 = vpop.f32.mrb[0].mxu0
    %v346 = vadd.f32 0.0, %v345
    %v347 = vpop.f32.mrb[0].mxu0
    %v348 = vadd.f32 0.0, %v347
    %349 = vdwg.mxu0
    %350 = vmatprep.subr.mxu0 0.0
    %351 = vmatpush1.msra.mxu0 %v130
    %352 = vmatprep.subr.mxu0 0.0
    %353 = vmatpush1.msra.mxu0 %v133
    %354 = vmatprep.subr.mxu0 0.0
    %355 = vmatpush1.msra.mxu0 %v136
    %356 = vmatprep.subr.mxu0 0.0
    %357 = vmatpush1.msra.mxu0 %v139
    %358 = vmatprep.subr.mxu0 0.0
    %359 = vmatpush1.msra.mxu0 0.0
    %360 = vmatprep.subr.mxu0 0.0
    %361 = vmatpush1.msra.mxu0 0.0
    %362 = vmatprep.subr.mxu0 0.0
    %363 = vmatpush1.msra.mxu0 0.0
    %364 = vmatprep.subr.mxu0 0.0
    %365 = vmatpush1.msra.mxu0 0.0
    %366 = vmatprep.subr.mxu0 0.0
    %367 = vmatpush1.msra.mxu0 0.0
    %368 = vmatprep.subr.mxu0 0.0
    %369 = vmatpush1.msra.mxu0 0.0
    %370 = vmatprep.subr.mxu0 0.0
    %371 = vmatpush1.msra.mxu0 0.0
    %372 = vmatprep.subr.mxu0 0.0
    %373 = vmatpush1.msra.mxu0 0.0
    %374 = vmatprep.subr.mxu0 0.0
    %375 = vmatpush1.msra.mxu0 0.0
    %376 = vmatprep.subr.mxu0 0.0
    %377 = vmatpush1.msra.mxu0 0.0
    %378 = vmatprep.subr.mxu0 0.0
    %379 = vmatpush1.msra.mxu0 0.0
    %380 = vmatprep.subr.mxu0 0.0
    %381 = vmatpush1.msra.mxu0 0.0
    %382 = vmatprep.subr.mxu0 0.0
    %383 = vmatpush1.msra.mxu0 0.0
    %384 = vmatprep.subr.mxu0 0.0
    %385 = vmatpush1.msra.mxu0 0.0
    %386 = vmatprep.subr.mxu0 0.0
    %387 = vmatpush1.msra.mxu0 0.0
    %388 = vmatprep.subr.mxu0 0.0
    %389 = vmatpush1.msra.mxu0 0.0
    %390 = vmatprep.subr.mxu0 0.0
    %391 = vmatpush1.msra.mxu0 0.0
    %392 = vmatprep.subr.mxu0 0.0
    %393 = vmatpush1.msra.mxu0 0.0
    %394 = vmatprep.subr.mxu0 0.0
    %395 = vmatpush1.msra.mxu0 0.0
    %396 = vmatprep.subr.mxu0 0.0
    %397 = vmatpush1.msra.mxu0 0.0
    %398 = vmatprep.subr.mxu0 0.0
    %399 = vmatpush1.msra.mxu0 0.0
    %400 = vmatprep.subr.mxu0 0.0
    %401 = vmatpush1.msra.mxu0 0.0
    %402 = vmatprep.subr.mxu0 0.0
    %403 = vmatpush1.msra.mxu0 0.0
    %404 = vmatprep.subr.mxu0 0.0
    %405 = vmatpush1.msra.mxu0 0.0
    %406 = vmatprep.subr.mxu0 0.0
    %407 = vmatpush1.msra.mxu0 0.0
    %408 = vmatprep.subr.mxu0 0.0
    %409 = vmatpush1.msra.mxu0 0.0
    %410 = vmatprep.subr.mxu0 0.0
    %411 = vmatpush1.msra.mxu0 0.0
    %412 = vmatprep.subr.mxu0 0.0
    %413 = vmatpush1.msra.mxu0 0.0
    %414 = vmatprep.mubr.f32.mxu0 0.0
    %415 = vmatmul.mubr.f32.gmra.mrb[0].mxu0 %v142
    %v416 = vpop.f32.mrb[0].mxu0
    %v417 = vadd.f32 0.0, %v416
    %v418 = vpop.f32.mrb[0].mxu0
    %419 = vmatprep.mubr.f32.mxu0 0.0
    %420 = vmatmul.mubr.f32.gmra.mrb[0].mxu0 %v145
    %v421 = vpop.f32.mrb[0].mxu0
    %v422 = vadd.f32 0.0, %v421
    %v423 = vpop.f32.mrb[0].mxu0
    %424 = vmatprep.mubr.f32.mxu0 0.0
    %425 = vmatmul.mubr.f32.gmra.mrb[0].mxu0 %v148
    %v426 = vpop.f32.mrb[0].mxu0
    %v427 = vadd.f32 0.0, %v426
    %v428 = vpop.f32.mrb[0].mxu0
    %429 = vmatprep.mubr.f32.mxu0 0.0
    %430 = vmatmul.mubr.f32.gmra.mrb[0].mxu0 %v151
    %v431 = vpop.f32.mrb[0].mxu0
    %v432 = vadd.f32 0.0, %v431
    %v433 = vpop.f32.mrb[0].mxu0
    %434 = vmatprep.mubr.f32.mxu0 0.0
    %435 = vmatmul.mubr.f32.gmra.mrb[0].mxu0 %v154
    %v436 = vpop.f32.mrb[0].mxu0
    %v437 = vadd.f32 0.0, %v436
    %v438 = vpop.f32.mrb[0].mxu0
    %439 = vmatprep.mubr.f32.mxu0 0.0
    %440 = vmatmul.mubr.f32.gmra.mrb[0].mxu0 %v157
    %v441 = vpop.f32.mrb[0].mxu0
    %v442 = vadd.f32 0.0, %v441
    %v443 = vpop.f32.mrb[0].mxu0
    %444 = vmatprep.mubr.f32.mxu0 0.0
    %445 = vmatmul.mubr.f32.gmra.mrb[0].mxu0 %v160
    %v446 = vpop.f32.mrb[0].mxu0
    %v447 = vadd.f32 0.0, %v446
    %v448 = vpop.f32.mrb[0].mxu0
    %449 = vmatprep.mubr.f32.mxu0 0.0
    %450 = vmatmul.mubr.f32.gmra.mrb[0].mxu0 %v163
    %v451 = vpop.f32.mrb[0].mxu0
    %v452 = vadd.f32 0.0, %v451
    %v453 = vpop.f32.mrb[0].mxu0
    %454 = vmatprep.mubr.f32.mxu0 0.0
    %455 = vmatmul.mubr.f32.gmra.mrb[0].mxu0 %v166
    %v456 = vpop.f32.mrb[0].mxu0
    %v457 = vadd.f32 0.0, %v456
    %v458 = vpop.f32.mrb[0].mxu0
    %459 = vmatprep.mubr.f32.mxu0 0.0
    %460 = vmatmul.mubr.f32.gmra.mrb[0].mxu0 %v169
    %v461 = vpop.f32.mrb[0].mxu0
    %v462 = vadd.f32 0.0, %v461
    %v463 = vpop.f32.mrb[0].mxu0
    %464 = vmatprep.mubr.f32.mxu0 0.0
    %465 = vmatmul.mubr.f32.gmra.mrb[0].mxu0 %v172
    %v466 = vpop.f32.mrb[0].mxu0
    %v467 = vadd.f32 0.0, %v466
    %v468 = vpop.f32.mrb[0].mxu0
    %469 = vmatprep.mubr.f32.mxu0 0.0
    %470 = vmatmul.mubr.f32.gmra.mrb[0].mxu0 %v175
    %v471 = vpop.f32.mrb[0].mxu0
    %v472 = vadd.f32 0.0, %v471
    %v473 = vpop.f32.mrb[0].mxu0
    %474 = vmatprep.mubr.f32.mxu0 0.0
    %475 = vmatmul.mubr.f32.gmra.mrb[0].mxu0 %v178
    %v476 = vpop.f32.mrb[0].mxu0
    %v477 = vadd.f32 0.0, %v476
    %v478 = vpop.f32.mrb[0].mxu0
    %479 = vmatprep.mubr.f32.mxu0 0.0
    %480 = vmatmul.mubr.f32.gmra.mrb[0].mxu0 %v181
    %v481 = vpop.f32.mrb[0].mxu0
    %v482 = vadd.f32 0.0, %v481
    %v483 = vpop.f32.mrb[0].mxu0
    %484 = vmatprep.mubr.f32.mxu0 0.0
    %485 = vmatmul.mubr.f32.gmra.mrb[0].mxu0 %v184
    %v486 = vpop.f32.mrb[0].mxu0
    %v487 = vadd.f32 0.0, %v486
    %v488 = vpop.f32.mrb[0].mxu0
    %489 = vmatprep.mubr.f32.mxu0 0.0
    %490 = vmatmul.mubr.f32.gmra.mrb[0].mxu0 %v187
    %v491 = vpop.f32.mrb[0].mxu0
    %v492 = vadd.f32 0.0, %v491
    %v493 = vpop.f32.mrb[0].mxu0
    %494 = vdwg.mxu0
    %v495 = vadd.f32 %v64, %v256
    %v496 = vadd.f32 %v65, %v258
    %v497 = vadd.f32 %v66, %v417
    %v498 = vadd.f32 %v67, %v262
    %v499 = vadd.f32 %v68, %v264
    %v500 = vadd.f32 %v69, %v422
    %v501 = vadd.f32 %v70, %v268
    %v502 = vadd.f32 %v71, %v270
    %v503 = vadd.f32 %v72, %v427
    %v504 = vadd.f32 %v73, %v274
    %v505 = vadd.f32 %v74, %v276
    %v506 = vadd.f32 %v75, %v432
    %v507 = vadd.f32 %v76, %v280
    %v508 = vadd.f32 %v77, %v282
    %v509 = vadd.f32 %v78, %v437
    %v510 = vadd.f32 %v79, %v286
    %v511 = vadd.f32 %v80, %v288
    %v512 = vadd.f32 %v81, %v442
    %v513 = vadd.f32 %v82, %v292
    %v514 = vadd.f32 %v83, %v294
    %v515 = vadd.f32 %v84, %v447
    %v516 = vadd.f32 %v85, %v298
    %v517 = vadd.f32 %v86, %v300
    %v518 = vadd.f32 %v87, %v452
    %v519 = vadd.f32 %v88, %v304
    %v520 = vadd.f32 %v89, %v306
    %v521 = vadd.f32 %v90, %v457
    %v522 = vadd.f32 %v91, %v310
    %v523 = vadd.f32 %v92, %v312
    %v524 = vadd.f32 %v93, %v462
    %v525 = vadd.f32 %v94, %v316
    %v526 = vadd.f32 %v95, %v318
    %v527 = vadd.f32 %v96, %v467
    %v528 = vadd.f32 %v97, %v322
    %v529 = vadd.f32 %v98, %v324
    %v530 = vadd.f32 %v99, %v472
    %v531 = vadd.f32 %v100, %v328
    %v532 = vadd.f32 %v101, %v330
    %v533 = vadd.f32 %v102, %v477
    %v534 = vadd.f32 %v103, %v334
    %v535 = vadd.f32 %v104, %v336
    %v536 = vadd.f32 %v105, %v482
    %v537 = vadd.f32 %v106, %v340
    %v538 = vadd.f32 %v107, %v342
    %v539 = vadd.f32 %v108, %v487
    %v540 = vadd.f32 %v109, %v346
    %v541 = vadd.f32 %v110, %v348
    %v542 = vadd.f32 %v111, %v492
    %543 = vst [vmem:[#allocation2] sm:$0xff] %v495
    %544 = vst [vmem:[#allocation2 + $0x8] sm:$0xff] %v496
    %545 = vst [vmem:[#allocation2 + $0x10] sm:$0xff] %v497
    %546 = vst [vmem:[#allocation2 + $0x18] sm:$0xff] %v498
    %547 = vst [vmem:[#allocation2 + $0x20] sm:$0xff] %v499
    %548 = vst [vmem:[#allocation2 + $0x28] sm:$0xff] %v500
    %549 = vst [vmem:[#allocation2 + $0x30] sm:$0xff] %v501
    %550 = vst [vmem:[#allocation2 + $0x38] sm:$0xff] %v502
    %551 = vst [vmem:[#allocation2 + $0x40] sm:$0xff] %v503
    %552 = vst [vmem:[#allocation2 + $0x48] sm:$0xff] %v504
    %553 = vst [vmem:[#allocation2 + $0x50] sm:$0xff] %v505
    %554 = vst [vmem:[#allocation2 + $0x58] sm:$0xff] %v506
    %555 = vst [vmem:[#allocation2 + $0x60] sm:$0xff] %v507
    %556 = vst [vmem:[#allocation2 + $0x68] sm:$0xff] %v508
    %557 = vst [vmem:[#allocation2 + $0x70] sm:$0xff] %v509
    %558 = vst [vmem:[#allocation2 + $0x78] sm:$0xff] %v510
    %559 = vst [vmem:[#allocation2 + $0x80] sm:$0xff] %v511
    %560 = vst [vmem:[#allocation2 + $0x88] sm:$0xff] %v512
    %561 = vst [vmem:[#allocation2 + $0x90] sm:$0xff] %v513
    %562 = vst [vmem:[#allocation2 + $0x98] sm:$0xff] %v514
    %563 = vst [vmem:[#allocation2 + $0xa0] sm:$0xff] %v515
    %564 = vst [vmem:[#allocation2 + $0xa8] sm:$0xff] %v516
    %565 = vst [vmem:[#allocation2 + $0xb0] sm:$0xff] %v517
    %566 = vst [vmem:[#allocation2 + $0xb8] sm:$0xff] %v518
    %567 = vst [vmem:[#allocation2 + $0xc0] sm:$0xff] %v519
    %568 = vst [vmem:[#allocation2 + $0xc8] sm:$0xff] %v520
    %569 = vst [vmem:[#allocation2 + $0xd0] sm:$0xff] %v521
    %570 = vst [vmem:[#allocation2 + $0xd8] sm:$0xff] %v522
    %571 = vst [vmem:[#allocation2 + $0xe0] sm:$0xff] %v523
    %572 = vst [vmem:[#allocation2 + $0xe8] sm:$0xff] %v524
    %573 = vst [vmem:[#allocation2 + $0xf0] sm:$0xff] %v525
    %574 = vst [vmem:[#allocation2 + $0xf8] sm:$0xff] %v526
    %575 = vst [vmem:[#allocation2 + $0x100] sm:$0xff] %v527
    %576 = vst [vmem:[#allocation2 + $0x108] sm:$0xff] %v528
    %577 = vst [vmem:[#allocation2 + $0x110] sm:$0xff] %v529
    %578 = vst [vmem:[#allocation2 + $0x118] sm:$0xff] %v530
    %579 = vst [vmem:[#allocation2 + $0x120] sm:$0xff] %v531
    %580 = vst [vmem:[#allocation2 + $0x128] sm:$0xff] %v532
    %581 = vst [vmem:[#allocation2 + $0x130] sm:$0xff] %v533
    %582 = vst [vmem:[#allocation2 + $0x138] sm:$0xff] %v534
    %583 = vst [vmem:[#allocation2 + $0x140] sm:$0xff] %v535
    %584 = vst [vmem:[#allocation2 + $0x148] sm:$0xff] %v536
    %585 = vst [vmem:[#allocation2 + $0x150] sm:$0xff] %v537
    %586 = vst [vmem:[#allocation2 + $0x158] sm:$0xff] %v538
    %587 = vst [vmem:[#allocation2 + $0x160] sm:$0xff] %v539
    %588 = vst [vmem:[#allocation2 + $0x168] sm:$0xff] %v540
    %589 = vst [vmem:[#allocation2 + $0x170] sm:$0xff] %v541
    %590 = vst [vmem:[#allocation2 + $0x178] sm:$0xff] %v542
    // Predicated region
    $region14: #{tpu_custom_call.1} parent=1 // pred_check
      %p591 = pneg %p12
    $region15: #{tpu_custom_call.1} parent=1 // pred_check_branch
      %593 = sbr.rel (%p591) target = $region17
    $region16: #{tpu_custom_call.1} parent=1 // pred_region
      %v594 = vld [vmem:[#allocation2] sm:$0xff]
      %v595 = vld [vmem:[#allocation2 + $0x8] sm:$0xff]
      %v596 = vld [vmem:[#allocation2 + $0x10] sm:$0xff]
      %v597 = vld [vmem:[#allocation2 + $0x18] sm:$0xff]
      %v598 = vld [vmem:[#allocation2 + $0x20] sm:$0xff]
      %v599 = vld [vmem:[#allocation2 + $0x28] sm:$0xff]
      %v600 = vld [vmem:[#allocation2 + $0x30] sm:$0xff]
      %v601 = vld [vmem:[#allocation2 + $0x38] sm:$0xff]
      %v602 = vld [vmem:[#allocation2 + $0x40] sm:$0xff]
      %v603 = vld [vmem:[#allocation2 + $0x48] sm:$0xff]
      %v604 = vld [vmem:[#allocation2 + $0x50] sm:$0xff]
      %v605 = vld [vmem:[#allocation2 + $0x58] sm:$0xff]
      %v606 = vld [vmem:[#allocation2 + $0x60] sm:$0xff]
      %v607 = vld [vmem:[#allocation2 + $0x68] sm:$0xff]
      %v608 = vld [vmem:[#allocation2 + $0x70] sm:$0xff]
      %v609 = vld [vmem:[#allocation2 + $0x78] sm:$0xff]
      %v610 = vld [vmem:[#allocation2 + $0x80] sm:$0xff]
      %v611 = vld [vmem:[#allocation2 + $0x88] sm:$0xff]
      %v612 = vld [vmem:[#allocation2 + $0x90] sm:$0xff]
      %v613 = vld [vmem:[#allocation2 + $0x98] sm:$0xff]
      %v614 = vld [vmem:[#allocation2 + $0xa0] sm:$0xff]
      %v615 = vld [vmem:[#allocation2 + $0xa8] sm:$0xff]
      %v616 = vld [vmem:[#allocation2 + $0xb0] sm:$0xff]
      %v617 = vld [vmem:[#allocation2 + $0xb8] sm:$0xff]
      %v618 = vld [vmem:[#allocation2 + $0xc0] sm:$0xff]
      %v619 = vld [vmem:[#allocation2 + $0xc8] sm:$0xff]
      %v620 = vld [vmem:[#allocation2 + $0xd0] sm:$0xff]
      %v621 = vld [vmem:[#allocation2 + $0xd8] sm:$0xff]
      %v622 = vld [vmem:[#allocation2 + $0xe0] sm:$0xff]
      %v623 = vld [vmem:[#allocation2 + $0xe8] sm:$0xff]
      %v624 = vld [vmem:[#allocation2 + $0xf0] sm:$0xff]
      %v625 = vld [vmem:[#allocation2 + $0xf8] sm:$0xff]
      %v626 = vld [vmem:[#allocation2 + $0x100] sm:$0xff]
      %v627 = vld [vmem:[#allocation2 + $0x108] sm:$0xff]
      %v628 = vld [vmem:[#allocation2 + $0x110] sm:$0xff]
      %v629 = vld [vmem:[#allocation2 + $0x118] sm:$0xff]
      %v630 = vld [vmem:[#allocation2 + $0x120] sm:$0xff]
      %v631 = vld [vmem:[#allocation2 + $0x128] sm:$0xff]
      %v632 = vld [vmem:[#allocation2 + $0x130] sm:$0xff]
      %v633 = vld [vmem:[#allocation2 + $0x138] sm:$0xff]
      %v634 = vld [vmem:[#allocation2 + $0x140] sm:$0xff]
      %v635 = vld [vmem:[#allocation2 + $0x148] sm:$0xff]
      %v636 = vld [vmem:[#allocation2 + $0x150] sm:$0xff]
      %v637 = vld [vmem:[#allocation2 + $0x158] sm:$0xff]
      %v638 = vld [vmem:[#allocation2 + $0x160] sm:$0xff]
      %v639 = vld [vmem:[#allocation2 + $0x168] sm:$0xff]
      %v640 = vld [vmem:[#allocation2 + $0x170] sm:$0xff]
      %v641 = vld [vmem:[#allocation2 + $0x178] sm:$0xff]
      %642 = vst [vmem:[#allocation3] sm:$0xff] %v594
      %643 = vst [vmem:[#allocation3 + $0x8] sm:$0xff] %v595
      %644 = vst [vmem:[#allocation3 + $0x10] sm:$0xff] %v596
      %645 = vst [vmem:[#allocation3 + $0x18] sm:$0xff] %v597
      %646 = vst [vmem:[#allocation3 + $0x20] sm:$0xff] %v598
      %647 = vst [vmem:[#allocation3 + $0x28] sm:$0xff] %v599
      %648 = vst [vmem:[#allocation3 + $0x30] sm:$0xff] %v600
      %649 = vst [vmem:[#allocation3 + $0x38] sm:$0xff] %v601
      %650 = vst [vmem:[#allocation3 + $0x40] sm:$0xff] %v602
      %651 = vst [vmem:[#allocation3 + $0x48] sm:$0xff] %v603
      %652 = vst [vmem:[#allocation3 + $0x50] sm:$0xff] %v604
      %653 = vst [vmem:[#allocation3 + $0x58] sm:$0xff] %v605
      %654 = vst [vmem:[#allocation3 + $0x60] sm:$0xff] %v606
      %655 = vst [vmem:[#allocation3 + $0x68] sm:$0xff] %v607
      %656 = vst [vmem:[#allocation3 + $0x70] sm:$0xff] %v608
      %657 = vst [vmem:[#allocation3 + $0x78] sm:$0xff] %v609
      %658 = vst [vmem:[#allocation3 + $0x80] sm:$0xff] %v610
      %659 = vst [vmem:[#allocation3 + $0x88] sm:$0xff] %v611
      %660 = vst [vmem:[#allocation3 + $0x90] sm:$0xff] %v612
      %661 = vst [vmem:[#allocation3 + $0x98] sm:$0xff] %v613
      %662 = vst [vmem:[#allocation3 + $0xa0] sm:$0xff] %v614
      %663 = vst [vmem:[#allocation3 + $0xa8] sm:$0xff] %v615
      %664 = vst [vmem:[#allocation3 + $0xb0] sm:$0xff] %v616
      %665 = vst [vmem:[#allocation3 + $0xb8] sm:$0xff] %v617
      %666 = vst [vmem:[#allocation3 + $0xc0] sm:$0xff] %v618
      %667 = vst [vmem:[#allocation3 + $0xc8] sm:$0xff] %v619
      %668 = vst [vmem:[#allocation3 + $0xd0] sm:$0xff] %v620
      %669 = vst [vmem:[#allocation3 + $0xd8] sm:$0xff] %v621
      %670 = vst [vmem:[#allocation3 + $0xe0] sm:$0xff] %v622
      %671 = vst [vmem:[#allocation3 + $0xe8] sm:$0xff] %v623
      %672 = vst [vmem:[#allocation3 + $0xf0] sm:$0xff] %v624
      %673 = vst [vmem:[#allocation3 + $0xf8] sm:$0xff] %v625
      %674 = vst [vmem:[#allocation3 + $0x100] sm:$0xff] %v626
      %675 = vst [vmem:[#allocation3 + $0x108] sm:$0xff] %v627
      %676 = vst [vmem:[#allocation3 + $0x110] sm:$0xff] %v628
      %677 = vst [vmem:[#allocation3 + $0x118] sm:$0xff] %v629
      %678 = vst [vmem:[#allocation3 + $0x120] sm:$0xff] %v630
      %679 = vst [vmem:[#allocation3 + $0x128] sm:$0xff] %v631
      %680 = vst [vmem:[#allocation3 + $0x130] sm:$0xff] %v632
      %681 = vst [vmem:[#allocation3 + $0x138] sm:$0xff] %v633
      %682 = vst [vmem:[#allocation3 + $0x140] sm:$0xff] %v634
      %683 = vst [vmem:[#allocation3 + $0x148] sm:$0xff] %v635
      %684 = vst [vmem:[#allocation3 + $0x150] sm:$0xff] %v636
      %685 = vst [vmem:[#allocation3 + $0x158] sm:$0xff] %v637
      %686 = vst [vmem:[#allocation3 + $0x160] sm:$0xff] %v638
      %687 = vst [vmem:[#allocation3 + $0x168] sm:$0xff] %v639
      %688 = vst [vmem:[#allocation3 + $0x170] sm:$0xff] %v640
      %689 = vst [vmem:[#allocation3 + $0x178] sm:$0xff] %v641
    $region17: #{tpu_custom_call.1} parent=1 // pred_fallthru
      _
    // Predicated region
    $region18: #{tpu_custom_call.1} parent=1 // pred_check
      _
    $region19: #{tpu_custom_call.1} parent=1 // pred_check_branch
      %691 = sbr.rel (0) target = $region21
    $region20: #{tpu_custom_call.1} parent=1 // pred_region
      %s693 = ssub.s32 6144, 6144
      %694 = vsyncadd [#allocation4], %s693
      %s695 = sshll.u32 [#allocation3], 4
      %s696 = int_to_ptr.vmem [resolvable:$true] %s695
      %701 = dma.vmem_to_hbm [thread:$0]  %s696, 6144, %s2, [#allocation4], 384, 384, 24
    $region21: #{tpu_custom_call.1} parent=1 // pred_fallthru
      _
    // Predicated region
    $region22: #{tpu_custom_call.1} parent=1 // pred_check
      _
    $region23: #{tpu_custom_call.1} parent=1 // pred_check_branch
      %703 = sbr.rel (0) target = $region25
    $region24: #{tpu_custom_call.1} parent=1 // pred_region
      %704 = dma.done [#allocation4], 6144
    $region25: #{tpu_custom_call.1} parent=1 // pred_fallthru
      _
    %705 = vsyncpa [#allocation4], 1

</llo_original>
